<compile_context>
chip_gen: v5e
topology: v5e:2x2
jax: 0.10.0
libtpu: 0.0.40
codegen_flags: <defaults>
</compile_context>

<pallas_src>
import jax
import jax.numpy as jnp
from jax import lax
from jax.experimental import pallas as pl
from jax.experimental.pallas import tpu as pltpu


# Keep the DFT matmuls exact-f32: the adaptive mask is a discrete decision on
# the energy path (see review correctness concern).  Drop to lax.Precision.HIGH
# only after re-validating mask stability at the target sizes.
_DFT_PRECISION = lax.Precision.HIGHEST


def _round_up(x, m):
    return (x + m - 1) // m * m


# --------------------------------------------------------------------------
# Pass 1: forward rFFT (ortho) + per-batch channel energy.
#   x_ref  : (1, C, N)   one batch, channels on sublanes, sequence on lanes
#   cf_ref : (N, Fp)     cos(2*pi*n*f/N)/sqrt(N)   (zero on padded columns)
#   sf_ref : (N, Fp)    -sin(2*pi*n*f/N)/sqrt(N)
# outputs:
#   xre/xim: (1, C, Fp)  real / imag spectrum
#   e_ref  : (1, 1, Fp)  sum over channels of |X|^2
# --------------------------------------------------------------------------
def fft_energy_kernel(x_ref, cf_ref, sf_ref, xre_ref, xim_ref, e_ref):
    x = x_ref[0]                                     # (C, N)
    cf = cf_ref[...]                                 # (N, Fp) VMEM-resident
    sf = sf_ref[...]
    xre = jnp.dot(x, cf, precision=_DFT_PRECISION,
                  preferred_element_type=jnp.float32)            # (C, Fp)
    xim = jnp.dot(x, sf, precision=_DFT_PRECISION,
                  preferred_element_type=jnp.float32)            # (C, Fp)
    xre_ref[0] = xre
    xim_ref[0] = xim
    # channel-energy reduction over the C sublanes (VPU/XLU, no selector matmul)
    e_ref[0] = jnp.sum(xre * xre + xim * xim, axis=0, keepdims=True)  # (1, Fp)


# --------------------------------------------------------------------------
# Pass 2: complex weighting + adaptive high-frequency mask + irFFT (ortho).
# The inverse reuses cf/sf by contracting the (padded) frequency axis; the
# Hermitian symmetry weights wsym are folded in as a per-column multiply.
# --------------------------------------------------------------------------
def weight_ifft_kernel(xre_ref, xim_ref, mask_ref, wsym_ref,
                       wre_ref, wim_ref, whre_ref, whim_ref,
                       cf_ref, sf_ref, o_ref):
    xre = xre_ref[0]                                 # (C, Fp)
    xim = xim_ref[0]
    m = mask_ref[0]                                  # (1, Fp) per-batch mask
    wsym = wsym_ref[...]                             # (1, Fp) Hermitian weights
    w_re = wre_ref[...]                              # (C, 1) per-channel weights
    w_im = wim_ref[...]
    wh_re = whre_ref[...]
    wh_im = whim_ref[...]

    # base complex weighting
    yre = xre * w_re - xim * w_im
    yim = xre * w_im + xim * w_re
    # adaptive high-frequency branch (mask broadcasts over the C sublanes)
    mre = xre * m
    mim = xim * m
    yre = yre + (mre * wh_re - mim * wh_im)
    yim = yim + (mre * wh_im + mim * wh_re)

    # fold Hermitian weights, then inverse transform = contract the F axis of
    # the forward DFT matrices (no separate ci/si matrices needed).
    zre = yre * wsym
    zim = yim * wsym
    cf = cf_ref[...]                                 # (N, Fp)
    sf = sf_ref[...]
    dn = (((1,), (1,)), ((), ()))                    # contract padded-F axis
    out = lax.dot_general(zre, cf, dn, precision=_DFT_PRECISION,
                          preferred_element_type=jnp.float32)    # (C, N)
    out = out + lax.dot_general(zim, sf, dn, precision=_DFT_PRECISION,
                                preferred_element_type=jnp.float32)
    o_ref[0] = out.astype(o_ref.dtype)


def adaptive_spectral_block(x, complex_weight, complex_weight_high, threshold_param):
    """x: (B, N, C). Returns (B, N, C), same dtype as x. adaptive_filter=True."""
    B, N, C = x.shape
    F = N // 2 + 1
    Fp = _round_up(F, 128)          # lane-dense frequency axis (use 256 on v6e/v7x
                                    # if the extra padding is affordable)
    in_dtype = x.dtype
    xf = x.astype(jnp.float32)

    # kernel layout: channels on sublanes, sequence/frequency on lanes.
    # TODO(synk): for large C (>=128) the (B,N,C)<->(B,C,N) transposes could be
    # absorbed into the DFT matmuls; at small C the explicit transpose is kept.
    x3 = jnp.transpose(xf, (0, 2, 1))                # (B, C, N)

    # Forward DFT matrices (ortho), zero-padded to Fp lane-dense columns.
    n = jnp.arange(N, dtype=jnp.float32)
    f = jnp.arange(Fp, dtype=jnp.float32)
    scale = 1.0 / jnp.sqrt(jnp.float32(N))
    ang = 2.0 * jnp.pi * jnp.outer(n, f) / N         # (N, Fp)
    valid = jnp.arange(Fp) < F
    cf = jnp.where(valid[None, :], jnp.cos(ang) * scale, 0.0)
    sf = jnp.where(valid[None, :], -jnp.sin(ang) * scale, 0.0)

    # Hermitian symmetry weights for the inverse (0 on padded columns).
    wsym = jnp.where(valid, 2.0, 0.0)
    wsym = wsym.at[0].set(1.0)
    if N % 2 == 0:
        wsym = wsym.at[F - 1].set(1.0)
    wsym = wsym.reshape(1, Fp).astype(jnp.float32)

    # Per-channel complex weights as (C, 1) columns (per-sublane broadcast).
    w_re = complex_weight[:, 0:1].astype(jnp.float32)
    w_im = complex_weight[:, 1:2].astype(jnp.float32)
    wh_re = complex_weight_high[:, 0:1].astype(jnp.float32)
    wh_im = complex_weight_high[:, 1:2].astype(jnp.float32)

    fsz = 4  # bytes per f32
    dft_resident = 2 * N * Fp * fsz

    # ---------------- pass 1: rFFT + energy ----------------
    step1 = (C * N + 2 * C * Fp + Fp) * fsz
    vmem1 = int(min(max(2 * dft_resident + 4 * step1 + (8 << 20), 16 << 20),
                    96 << 20))
    cost1 = pl.CostEstimate(
        flops=4 * B * C * N * Fp,
        transcendentals=0,
        bytes_accessed=fsz * (B * C * N + 2 * N * Fp + 2 * B * C * Fp + B * Fp))

    xre, xim, energy_p = pl.pallas_call(
        fft_energy_kernel,
        out_shape=(jax.ShapeDtypeStruct((B, C, Fp), jnp.float32),
                   jax.ShapeDtypeStruct((B, C, Fp), jnp.float32),
                   jax.ShapeDtypeStruct((B, 1, Fp), jnp.float32)),
        grid=(B,),
        in_specs=[pl.BlockSpec((1, C, N), lambda b: (b, 0, 0)),
                  pl.BlockSpec((N, Fp), lambda b: (0, 0)),
                  pl.BlockSpec((N, Fp), lambda b: (0, 0))],
        out_specs=(pl.BlockSpec((1, C, Fp), lambda b: (b, 0, 0)),
                   pl.BlockSpec((1, C, Fp), lambda b: (b, 0, 0)),
                   pl.BlockSpec((1, 1, Fp), lambda b: (b, 0, 0))),
        compiler_params=pltpu.CompilerParams(
            dimension_semantics=("parallel",),
            vmem_limit_bytes=vmem1),
        cost_estimate=cost1,
    )(x3, cf, sf)

    # ---------------- tiny (B, F) median / quantile / mask in plain JAX ------
    energy = energy_p[:, 0, :F]                                   # (B, F)
    med = jnp.sort(energy, axis=1)[:, (F - 1) // 2][:, None]      # torch lower-middle
    ne = energy / (med + 1e-6)
    thr = jnp.quantile(ne.reshape(-1),
                       threshold_param.reshape(()).astype(jnp.float32))  # linear
    mask = (ne > thr).astype(jnp.float32)                         # (B, F)
    mask_p = jnp.zeros((B, 1, Fp), jnp.float32).at[:, 0, :F].set(mask)

    # ---------------- pass 2: weighting + mask + irFFT ----------------
    step2 = (2 * C * Fp + Fp + C * N) * fsz
    vmem2 = int(min(max(2 * dft_resident + 4 * step2 + (8 << 20), 16 << 20),
                    96 << 20))
    cost2 = pl.CostEstimate(
        flops=4 * B * C * N * Fp + 14 * B * C * Fp,
        transcendentals=0,
        bytes_accessed=fsz * (2 * B * C * Fp + B * Fp + Fp + 4 * C
                              + 2 * N * Fp + B * C * N))

    out3 = pl.pallas_call(
        weight_ifft_kernel,
        out_shape=jax.ShapeDtypeStruct((B, C, N), jnp.float32),
        grid=(B,),
        in_specs=[pl.BlockSpec((1, C, Fp), lambda b: (b, 0, 0)),
                  pl.BlockSpec((1, C, Fp), lambda b: (b, 0, 0)),
                  pl.BlockSpec((1, 1, Fp), lambda b: (b, 0, 0)),
                  pl.BlockSpec((1, Fp), lambda b: (0, 0)),
                  pl.BlockSpec((C, 1), lambda b: (0, 0)),
                  pl.BlockSpec((C, 1), lambda b: (0, 0)),
                  pl.BlockSpec((C, 1), lambda b: (0, 0)),
                  pl.BlockSpec((C, 1), lambda b: (0, 0)),
                  pl.BlockSpec((N, Fp), lambda b: (0, 0)),
                  pl.BlockSpec((N, Fp), lambda b: (0, 0))],
        out_specs=pl.BlockSpec((1, C, N), lambda b: (b, 0, 0)),
        compiler_params=pltpu.CompilerParams(
            dimension_semantics=("parallel",),
            vmem_limit_bytes=vmem2),
        cost_estimate=cost2,
    )(xre, xim, mask_p, wsym, w_re, w_im, wh_re, wh_im, cf, sf)

    out = jnp.transpose(out3, (0, 2, 1))                          # (B, N, C)
    return out.astype(in_dtype)


def reference(x, w, wh, thr_param):
    """Pure-JAX reference mirroring the PyTorch forward."""
    B, N, C = x.shape
    xf = x.astype(jnp.float32)
    x_fft = jnp.fft.rfft(xf, axis=1, norm='ortho')                 # (B, F, C)
    weight = w[:, 0] + 1j * w[:, 1]
    xw = x_fft * weight[None, None, :]
    energy = jnp.sum(jnp.abs(x_fft) ** 2, axis=-1)                 # (B, F)
    Fd = energy.shape[1]
    med = jnp.sort(energy, axis=1)[:, (Fd - 1) // 2][:, None]      # torch lower-middle
    ne = energy / (med + 1e-6)
    thr = jnp.quantile(ne.reshape(-1), thr_param.reshape(()))      # linear interp
    mask = (ne > thr).astype(jnp.float32)[:, :, None]
    wh_c = wh[:, 0] + 1j * wh[:, 1]
    xw = xw + (x_fft * mask) * wh_c[None, None, :]
    out = jnp.fft.irfft(xw, n=N, axis=1, norm='ortho')
    return out.astype(x.dtype)


if __name__ == "__main__":
    key = jax.random.PRNGKey(0)
    B, N, C = 2, 16, 4
    k1, k2, k3, k4 = jax.random.split(key, 4)

    x = jax.random.normal(k1, (B, N, C), jnp.float32)
    complex_weight = jax.random.normal(k2, (C, 2), jnp.float32) * 0.02
    complex_weight_high = jax.random.normal(k3, (C, 2), jnp.float32) * 0.02
    threshold_param = jax.random.uniform(k4, (1,), jnp.float32) * 0.5

    out = adaptive_spectral_block(x, complex_weight, complex_weight_high,
                                  threshold_param)
    out = jax.block_until_ready(out)

    ref = reference(x, complex_weight, complex_weight_high, threshold_param)
    assert out.shape == x.shape and out.dtype == x.dtype
    if not jnp.allclose(out, ref, atol=1e-4, rtol=1e-4):
        raise AssertionError(
            f"kernel/ref mismatch, max abs err = {float(jnp.max(jnp.abs(out - ref)))}")
    print("KERNEL_OK")
</pallas_src>

<mosaic_0001>
module attributes {stable_mosaic.version = 11 : i64} {
  func.func @fft_energy_kernel(%arg0: i32, %arg1: memref<1x4x16xf32, #tpu.memory_space<vmem>>, %arg2: memref<16x128xf32, #tpu.memory_space<vmem>>, %arg3: memref<16x128xf32, #tpu.memory_space<vmem>>, %arg4: memref<1x4x128xf32, #tpu.memory_space<vmem>>, %arg5: memref<1x4x128xf32, #tpu.memory_space<vmem>>, %arg6: memref<1x1x128xf32, #tpu.memory_space<vmem>>) attributes {dimension_semantics = [#tpu.dimension_semantics<parallel>], iteration_bounds = array<i64: 2>, scalar_prefetch = 0 : i64, scratch_operands = 0 : i64, tpu.core_type = #tpu.core_type<tc>, window_params = [{transform_indices = @transform_0, window_bounds = array<i64: 1, 4, 16>}, {pipeline_mode = #tpu.pipeline_mode<synchronous>, transform_indices = @transform_1, window_bounds = array<i64: 16, 128>}, {pipeline_mode = #tpu.pipeline_mode<synchronous>, transform_indices = @transform_2, window_bounds = array<i64: 16, 128>}, {transform_indices = @transform_3, window_bounds = array<i64: 1, 4, 128>}, {transform_indices = @transform_4, window_bounds = array<i64: 1, 4, 128>}, {transform_indices = @transform_5, window_bounds = array<i64: 1, 1, 128>}]} {
    %c0 = arith.constant 0 : index
    %c0_0 = arith.constant 0 : index
    %c0_1 = arith.constant 0 : index
    %0 = vector.load %arg1[%c0, %c0_0, %c0_1] : memref<1x4x16xf32, #tpu.memory_space<vmem>>, vector<1x4x16xf32>
    %1 = vector.shape_cast %0 : vector<1x4x16xf32> to vector<4x16xf32>
    %c0_2 = arith.constant 0 : index
    %c0_3 = arith.constant 0 : index
    %2 = vector.load %arg2[%c0_2, %c0_3] : memref<16x128xf32, #tpu.memory_space<vmem>>, vector<16x128xf32>
    %c0_4 = arith.constant 0 : index
    %c0_5 = arith.constant 0 : index
    %3 = vector.load %arg3[%c0_4, %c0_5] : memref<16x128xf32, #tpu.memory_space<vmem>>, vector<16x128xf32>
    %cst = arith.constant dense<0.000000e+00> : vector<4x128xf32>
    %4 = tpu.matmul %1, %2, %cst {dimension_numbers = #tpu.dot_dimension_numbers<[1], [0], [0], [1], [0, 0, 1, 1], [], []>, precision = #tpu.contract_precision<fp32>} : vector<4x16xf32>, vector<16x128xf32>, vector<4x128xf32> -> vector<4x128xf32>
    %cst_6 = arith.constant dense<0.000000e+00> : vector<4x128xf32>
    %5 = tpu.matmul %1, %3, %cst_6 {dimension_numbers = #tpu.dot_dimension_numbers<[1], [0], [0], [1], [0, 0, 1, 1], [], []>, precision = #tpu.contract_precision<fp32>} : vector<4x16xf32>, vector<16x128xf32>, vector<4x128xf32> -> vector<4x128xf32>
    %c0_7 = arith.constant 0 : index
    %c0_8 = arith.constant 0 : index
    %c0_9 = arith.constant 0 : index
    %6 = vector.load %arg4[%c0_7, %c0_8, %c0_9] : memref<1x4x128xf32, #tpu.memory_space<vmem>>, vector<1x4x128xf32>
    %7 = vector.shape_cast %6 : vector<1x4x128xf32> to vector<4x128xf32>
    %8 = vector.shape_cast %4 : vector<4x128xf32> to vector<1x4x128xf32>
    tpu.vector_store %arg4[%c0_7, %c0_8, %c0_9], %8 {strides = array<i32>} : memref<1x4x128xf32, #tpu.memory_space<vmem>>, vector<1x4x128xf32>,
    %c0_10 = arith.constant 0 : index
    %c0_11 = arith.constant 0 : index
    %c0_12 = arith.constant 0 : index
    %9 = vector.load %arg5[%c0_10, %c0_11, %c0_12] : memref<1x4x128xf32, #tpu.memory_space<vmem>>, vector<1x4x128xf32>
    %10 = vector.shape_cast %9 : vector<1x4x128xf32> to vector<4x128xf32>
    %11 = vector.shape_cast %5 : vector<4x128xf32> to vector<1x4x128xf32>
    tpu.vector_store %arg5[%c0_10, %c0_11, %c0_12], %11 {strides = array<i32>} : memref<1x4x128xf32, #tpu.memory_space<vmem>>, vector<1x4x128xf32>,
    %12 = arith.mulf %4, %4 : vector<4x128xf32>
    %13 = arith.mulf %5, %5 : vector<4x128xf32>
    %14 = arith.addf %12, %13 : vector<4x128xf32>
    %cst_13 = arith.constant dense<0.000000e+00> : vector<128xf32>
    %15 = vector.multi_reduction <add>, %14, %cst_13 [0] : vector<4x128xf32> to vector<128xf32>
    %16 = vector.shape_cast %15 : vector<128xf32> to vector<1x128xf32>
    %c0_14 = arith.constant 0 : index
    %c0_15 = arith.constant 0 : index
    %c0_16 = arith.constant 0 : index
    %17 = vector.load %arg6[%c0_14, %c0_15, %c0_16] : memref<1x1x128xf32, #tpu.memory_space<vmem>>, vector<1x1x128xf32>
    %18 = vector.shape_cast %17 : vector<1x1x128xf32> to vector<1x128xf32>
    %19 = vector.shape_cast %16 : vector<1x128xf32> to vector<1x1x128xf32>
    tpu.vector_store %arg6[%c0_14, %c0_15, %c0_16], %19 {strides = array<i32>} : memref<1x1x128xf32, #tpu.memory_space<vmem>>, vector<1x1x128xf32>,
    return
  }
  func.func @transform_0(%arg0: i32) -> (i32, i32, i32) {
    %c0_i32 = arith.constant 0 : i32
    %c0_i32_0 = arith.constant 0 : i32
    %c0_i32_1 = arith.constant 0 : i32
    return %arg0, %c0_i32, %c0_i32_0 : i32, i32, i32
  }
  func.func @transform_1(%arg0: i32) -> (i32, i32) {
    %c0_i32 = arith.constant 0 : i32
    %c0_i32_0 = arith.constant 0 : i32
    %c0_i32_1 = arith.constant 0 : i32
    return %c0_i32, %c0_i32_0 : i32, i32
  }
  func.func @transform_2(%arg0: i32) -> (i32, i32) {
    %c0_i32 = arith.constant 0 : i32
    %c0_i32_0 = arith.constant 0 : i32
    %c0_i32_1 = arith.constant 0 : i32
    return %c0_i32, %c0_i32_0 : i32, i32
  }
  func.func @transform_3(%arg0: i32) -> (i32, i32, i32) {
    %c0_i32 = arith.constant 0 : i32
    %c0_i32_0 = arith.constant 0 : i32
    %c0_i32_1 = arith.constant 0 : i32
    return %arg0, %c0_i32, %c0_i32_0 : i32, i32, i32
  }
  func.func @transform_4(%arg0: i32) -> (i32, i32, i32) {
    %c0_i32 = arith.constant 0 : i32
    %c0_i32_0 = arith.constant 0 : i32
    %c0_i32_1 = arith.constant 0 : i32
    return %arg0, %c0_i32, %c0_i32_0 : i32, i32, i32
  }
  func.func @transform_5(%arg0: i32) -> (i32, i32, i32) {
    %c0_i32 = arith.constant 0 : i32
    %c0_i32_0 = arith.constant 0 : i32
    %c0_i32_1 = arith.constant 0 : i32
    return %arg0, %c0_i32, %c0_i32_0 : i32, i32, i32
  }
}

</mosaic_0001>

<llo_original>
// kernel: tpu_custom_call.1
$region0: #{tpu_custom_call.1}
  #allocation0 [shape = 'u32[]', space=smem, size = 0x4, offset = 0x4, fixed_abs, tag = 'smem constant byte address 0x4 - core index']
  #allocation1 [shape = 'u32[72,128]{1,0:T(1,128)}', space=vmem, size = 0x9000, scoped, tag = 'internal scratch']
  %s0 = inlined_call_operand.hbm [shape: f32[2,4,16], index: 0, kind: input, shape index: {}]
  %s1 = inlined_call_operand.hbm [shape: f32[16,128], index: 1, kind: input, shape index: {}]
  %s2 = inlined_call_operand.hbm [shape: f32[16,128], index: 2, kind: input, shape index: {}]
  %s3 = inlined_call_operand.hbm [shape: f32[2,4,128], index: 3, kind: output, shape index: {0}]
  %s4 = inlined_call_operand.hbm [shape: f32[2,4,128], index: 4, kind: output, shape index: {1}]
  %s5 = inlined_call_operand.hbm [shape: f32[2,1,128], index: 5, kind: output, shape index: {2}]
  %6 = xla_tuple %s3, %s4, %s5
  %s7 = sld [smem:[#allocation0]]
  $region73: #{tpu_custom_call.1} parent=0
    _
  %s9 = ssub.s32 1, %s7
  %s10 = scalar_select 0, %s9, %s7
  $region1: #{tpu_custom_call.1} parent=0
    #allocation2 [shape = 'u8[4096]{0}', space=vmem, size = 0x1000, scoped, tag = 'input window, operand 0']
    #allocation3 [shape = 's32[2]{0}', space=sflag, size = 0x8, scoped, tag = 'scoped memory for tpu_custom_call.1']
    #allocation4 [shape = 's32[2]{0}', space=sflag, size = 0x8, scoped, tag = 'scoped memory for tpu_custom_call.1']
    #allocation5 [shape = 'u8[8192]{0}', space=vmem, size = 0x2000, scoped, tag = 'input window, operand 1, single buffered']
    #allocation6 [shape = 's32[1]{0}', space=sflag, size = 0x4, scoped, tag = 'scoped memory for tpu_custom_call.1']
    #allocation7 [shape = 'u8[8192]{0}', space=vmem, size = 0x2000, scoped, tag = 'input window, operand 2, single buffered']
    #allocation8 [shape = 'u8[4096]{0}', space=vmem, size = 0x1000, scoped, tag = 'output window, operand 0']
    #allocation9 [shape = 'u8[4096]{0}', space=vmem, size = 0x1000, scoped, tag = 'output window, operand 1']
    #allocation10 [shape = 's32[2]{0}', space=sflag, size = 0x8, scoped, tag = 'scoped memory for tpu_custom_call.1']
    #allocation11 [shape = 'u8[1024]{0}', space=vmem, size = 0x400, scoped, tag = 'output window, operand 2']
    %11 = vsyncpa [#allocation3], 0
    %s12 = scalar_lea.sflag [#allocation3], 1
    %13 = vsyncpa %s12, 0
    %14 = vsyncpa [#allocation6], 0
    %15 = vsyncpa [#allocation4], 0
    %s16 = scalar_lea.sflag [#allocation4], 1
    %17 = vsyncpa %s16, 0
    %18 = vsyncpa [#allocation10], 0
    %s19 = scalar_lea.sflag [#allocation10], 1
    %20 = vsyncpa %s19, 0
    loop: start=0, step=1, limit=4
    $region2: #{tpu_custom_call.1} parent=1 // loop_pre_header
      _
    $region3: #{tpu_custom_call.1} parent=1 // loop_header
      %s22 = sphi 0, %s26
      %p23 = scmp.ge.s32.totalorder %s22, 4
      %s32 = sphi 0, %s34
      %s35 = sphi 0, %s32
      %s36 = sphi 0, %s35
      %s52 = sphi 0, %s36
      %s56 = sphi 0, %s56
      %s58 = sphi 0, %s56
      %s59 = sphi 0, %s58
      %s73 = sphi 0, %s59
      %s77 = sphi 0, %s77
      %s79 = sphi 0, %s77
      %s80 = sphi 0, %s79
      %s94 = sphi 0, %s80
      %s100 = sphi 0, %s102
      %s103 = sphi 0, %s100
      %s104 = sphi 0, %s103
      %s120 = sphi 0, %s104
      %s126 = sphi 0, %s128
      %s129 = sphi 0, %s126
      %s130 = sphi 0, %s129
      %s146 = sphi 0, %s130
      %s152 = sphi 0, %s154
      %s155 = sphi 0, %s152
      %s156 = sphi 0, %s155
      %s172 = sphi 0, %s156
    $region4: #{tpu_custom_call.1} parent=1 // loop_header_branch
      %25 = sbr.rel (%p23) target = $region8
    $region5: #{tpu_custom_call.1} parent=1 // loop_body
      %s27 = ssub.s32 %s22, 1
      %s28 = ssub.s32 %s22, 2
      %s29 = sadd.s32 %s22, 1
      %s30 = ssub.s32 %s22, %s29
      %p31 = scmp.eq.s32.totalorder %s30, 0
      %s33 = sadd.s32 %s32, 1
      %s34 = scalar_select %p31, %s32, %s33
      %p37 = pneg %p31
      %p38 = scmp.eq.s32.totalorder %s22, 1
      %p39 = por %p37, %p38
      %p40 = scmp.ne.s32.totalorder %s32, %s35
      %p41 = scmp.eq.s32.totalorder %s22, 0
      %p42 = por %p40, %p41
      %p43 = scmp.ne.s32.totalorder %s32, %s35
      %p44 = scmp.eq.s32.totalorder %s27, 1
      %p45 = por %p43, %p44
      %p46 = scmp.ne.s32.totalorder %s35, %s36
      %p47 = scmp.eq.s32.totalorder %s27, 0
      %p48 = por %p46, %p47
      %p49 = scmp.ne.s32.totalorder %s35, %s36
      %p50 = scmp.eq.s32.totalorder %s28, 1
      %p51 = por %p49, %p50
      %p53 = scmp.ne.s32.totalorder %s36, %s52
      %p54 = scmp.eq.s32.totalorder %s28, 0
      %p55 = por %p53, %p54
      %s57 = sadd.s32 %s56, 1
      %p60 = scmp.eq.s32.totalorder %s22, 1
      %p61 = scmp.ne.s32.totalorder %s56, %s58
      %p62 = scmp.eq.s32.totalorder %s22, 0
      %p63 = por %p61, %p62
      %p64 = scmp.ne.s32.totalorder %s56, %s58
      %p65 = scmp.eq.s32.totalorder %s27, 1
      %p66 = por %p64, %p65
      %p67 = scmp.ne.s32.totalorder %s58, %s59
      %p68 = scmp.eq.s32.totalorder %s27, 0
      %p69 = por %p67, %p68
      %p70 = scmp.ne.s32.totalorder %s58, %s59
      %p71 = scmp.eq.s32.totalorder %s28, 1
      %p72 = por %p70, %p71
      %p74 = scmp.ne.s32.totalorder %s59, %s73
      %p75 = scmp.eq.s32.totalorder %s28, 0
      %p76 = por %p74, %p75
      %s78 = sadd.s32 %s77, 1
      %p81 = scmp.eq.s32.totalorder %s22, 1
      %p82 = scmp.ne.s32.totalorder %s77, %s79
      %p83 = scmp.eq.s32.totalorder %s22, 0
      %p84 = por %p82, %p83
      %p85 = scmp.ne.s32.totalorder %s77, %s79
      %p86 = scmp.eq.s32.totalorder %s27, 1
      %p87 = por %p85, %p86
      %p88 = scmp.ne.s32.totalorder %s79, %s80
      %p89 = scmp.eq.s32.totalorder %s27, 0
      %p90 = por %p88, %p89
      %p91 = scmp.ne.s32.totalorder %s79, %s80
      %p92 = scmp.eq.s32.totalorder %s28, 1
      %p93 = por %p91, %p92
      %p95 = scmp.ne.s32.totalorder %s80, %s94
      %p96 = scmp.eq.s32.totalorder %s28, 0
      %p97 = por %p95, %p96
      %s98 = ssub.s32 %s22, %s29
      %p99 = scmp.eq.s32.totalorder %s98, 0
      %s101 = sadd.s32 %s100, 1
      %s102 = scalar_select %p99, %s100, %s101
      %p105 = pneg %p99
      %p106 = scmp.eq.s32.totalorder %s22, 1
      %p107 = por %p105, %p106
      %p108 = scmp.ne.s32.totalorder %s100, %s103
      %p109 = scmp.eq.s32.totalorder %s22, 0
      %p110 = por %p108, %p109
      %p111 = scmp.ne.s32.totalorder %s100, %s103
      %p112 = scmp.eq.s32.totalorder %s27, 1
      %p113 = por %p111, %p112
      %p114 = scmp.ne.s32.totalorder %s103, %s104
      %p115 = scmp.eq.s32.totalorder %s27, 0
      %p116 = por %p114, %p115
      %p117 = scmp.ne.s32.totalorder %s103, %s104
      %p118 = scmp.eq.s32.totalorder %s28, 1
      %p119 = por %p117, %p118
      %p121 = scmp.ne.s32.totalorder %s104, %s120
      %p122 = scmp.eq.s32.totalorder %s28, 0
      %p123 = por %p121, %p122
      %s124 = ssub.s32 %s22, %s29
      %p125 = scmp.eq.s32.totalorder %s124, 0
      %s127 = sadd.s32 %s126, 1
      %s128 = scalar_select %p125, %s126, %s127
      %p131 = pneg %p125
      %p132 = scmp.eq.s32.totalorder %s22, 1
      %p133 = por %p131, %p132
      %p134 = scmp.ne.s32.totalorder %s126, %s129
      %p135 = scmp.eq.s32.totalorder %s22, 0
      %p136 = por %p134, %p135
      %p137 = scmp.ne.s32.totalorder %s126, %s129
      %p138 = scmp.eq.s32.totalorder %s27, 1
      %p139 = por %p137, %p138
      %p140 = scmp.ne.s32.totalorder %s129, %s130
      %p141 = scmp.eq.s32.totalorder %s27, 0
      %p142 = por %p140, %p141
      %p143 = scmp.ne.s32.totalorder %s129, %s130
      %p144 = scmp.eq.s32.totalorder %s28, 1
      %p145 = por %p143, %p144
      %p147 = scmp.ne.s32.totalorder %s130, %s146
      %p148 = scmp.eq.s32.totalorder %s28, 0
      %p149 = por %p147, %p148
      %s150 = ssub.s32 %s22, %s29
      %p151 = scmp.eq.s32.totalorder %s150, 0
      %s153 = sadd.s32 %s152, 1
      %s154 = scalar_select %p151, %s152, %s153
      %p157 = pneg %p151
      %p158 = scmp.eq.s32.totalorder %s22, 1
      %p159 = por %p157, %p158
      %p160 = scmp.ne.s32.totalorder %s152, %s155
      %p161 = scmp.eq.s32.totalorder %s22, 0
      %p162 = por %p160, %p161
      %p163 = scmp.ne.s32.totalorder %s152, %s155
      %p164 = scmp.eq.s32.totalorder %s27, 1
      %p165 = por %p163, %p164
      %p166 = scmp.ne.s32.totalorder %s155, %s156
      %p167 = scmp.eq.s32.totalorder %s27, 0
      %p168 = por %p166, %p167
      %p169 = scmp.ne.s32.totalorder %s155, %s156
      %p170 = scmp.eq.s32.totalorder %s28, 1
      %p171 = por %p169, %p170
      %p173 = scmp.ne.s32.totalorder %s156, %s172
      %p174 = scmp.eq.s32.totalorder %s28, 0
      %p175 = por %p173, %p174
      %p176 = scmp.le.s32.totalorder 1, %s22
      %p177 = scmp.lt.s32.totalorder %s22, 3
      %p178 = pnand %p176, %p177
      %p179 = pneg %p178
      // Predicated region
      $region9: #{tpu_custom_call.1} parent=5 // pred_check
        _
      $region10: #{tpu_custom_call.1} parent=5 // pred_check_branch
        %181 = sbr.rel (%p178) target = $region12
      $region11: #{tpu_custom_call.1} parent=5 // pred_region
        %s182 = ssub.s32 %s22, 1
        // Predicated region
        $region13: #{tpu_custom_call.1} parent=11 // pred_check
          %p183 = pneg %p69
        $region14: #{tpu_custom_call.1} parent=11 // pred_check_branch
          %185 = sbr.rel (%p183) target = $region16
        $region15: #{tpu_custom_call.1} parent=11 // pred_region
          %187 = vsyncadd [#allocation6], 0
          %s188 = sshll.u32 %s1, 4
          %s189 = int_to_ptr.hbm [resolvable:$true] %s188
          %s190 = sshll.u32 [#allocation5], 4
          %s191 = int_to_ptr.vmem [resolvable:$true] %s190
          %196 = dma.hbm_to_vmem [thread:$0]  %s189, 256, %s191, [#allocation6], 128, 128, 8
        $region16: #{tpu_custom_call.1} parent=11 // pred_fallthru
          _
        // Predicated region
        $region17: #{tpu_custom_call.1} parent=11 // pred_check
          %p197 = pneg %p90
        $region18: #{tpu_custom_call.1} parent=11 // pred_check_branch
          %199 = sbr.rel (%p197) target = $region20
        $region19: #{tpu_custom_call.1} parent=11 // pred_region
          %201 = vsyncadd [#allocation6], 0
          %s202 = sshll.u32 %s2, 4
          %s203 = int_to_ptr.hbm [resolvable:$true] %s202
          %s204 = sshll.u32 [#allocation7], 4
          %s205 = int_to_ptr.vmem [resolvable:$true] %s204
          %210 = dma.hbm_to_vmem [thread:$0]  %s203, 256, %s205, [#allocation6], 128, 128, 8
        $region20: #{tpu_custom_call.1} parent=11 // pred_fallthru
          _
      $region12: #{tpu_custom_call.1} parent=5 // pred_fallthru
        _
      %p211 = scmp.lt.s32.totalorder %s22, 2
      // Predicated region
      $region21: #{tpu_custom_call.1} parent=5 // pred_check
        %p212 = pneg %p211
      $region22: #{tpu_custom_call.1} parent=5 // pred_check_branch
        %214 = sbr.rel (%p212) target = $region24
      $region23: #{tpu_custom_call.1} parent=5 // pred_region
        // Predicated region
        $region25: #{tpu_custom_call.1} parent=23 // pred_check
          %p215 = pneg %p42
        $region26: #{tpu_custom_call.1} parent=23 // pred_check_branch
          %217 = sbr.rel (%p215) target = $region28
        $region27: #{tpu_custom_call.1} parent=23 // pred_region
          %s218 = sand.u32 %s32, 1
          %s219 = scalar_lea.sflag [#allocation3], %s218
          %s220 = sand.u32 %s32, 1
          %s221 = smul.addr %s220, 4
          %s222 = scalar_lea.vmem [#allocation2], %s221
          %224 = vsyncadd %s219, 0
          %s225 = smul.addr %s22, 4
          %s226 = scalar_lea.hbm %s0, %s225
          %s228 = sshll.u32 %s226, 4
          %s229 = int_to_ptr.hbm [resolvable:$true] %s228
          %s230 = sshll.u32 %s222, 4
          %s231 = int_to_ptr.vmem [resolvable:$true] %s230
          %233 = dma.hbm_to_vmem [thread:$0]  %s229, 64, %s231, %s219
        $region28: #{tpu_custom_call.1} parent=23 // pred_fallthru
          _
      $region24: #{tpu_custom_call.1} parent=5 // pred_fallthru
        _
      %p234 = scmp.le.s32.totalorder 1, %s22
      %p235 = scmp.lt.s32.totalorder %s22, 3
      %p236 = pnand %p234, %p235
      %p237 = pneg %p236
      // Predicated region
      $region29: #{tpu_custom_call.1} parent=5 // pred_check
        _
      $region30: #{tpu_custom_call.1} parent=5 // pred_check_branch
        %239 = sbr.rel (%p236) target = $region32
      $region31: #{tpu_custom_call.1} parent=5 // pred_region
        %s240 = ssub.s32 %s22, 1
        %s241 = sand.u32 %s35, 1
        %s242 = scalar_lea.sflag [#allocation3], %s241
        %s243 = sand.u32 %s35, 1
        %s244 = smul.addr %s243, 4
        %s245 = scalar_lea.vmem [#allocation2], %s244
        // Predicated region
        $region33: #{tpu_custom_call.1} parent=31 // pred_check
          %p246 = pneg %p48
        $region34: #{tpu_custom_call.1} parent=31 // pred_check_branch
          %248 = sbr.rel (%p246) target = $region36
        $region35: #{tpu_custom_call.1} parent=31 // pred_region
          %250 = dma.done %s242, 64
        $region36: #{tpu_custom_call.1} parent=31 // pred_fallthru
          _
        // Predicated region
        $region37: #{tpu_custom_call.1} parent=31 // pred_check
          %p251 = pneg %p69
        $region38: #{tpu_custom_call.1} parent=31 // pred_check_branch
          %253 = sbr.rel (%p251) target = $region40
        $region39: #{tpu_custom_call.1} parent=31 // pred_region
          %255 = dma.done [#allocation6], 256
        $region40: #{tpu_custom_call.1} parent=31 // pred_fallthru
          _
        // Predicated region
        $region41: #{tpu_custom_call.1} parent=31 // pred_check
          %p256 = pneg %p90
        $region42: #{tpu_custom_call.1} parent=31 // pred_check_branch
          %258 = sbr.rel (%p256) target = $region44
        $region43: #{tpu_custom_call.1} parent=31 // pred_region
          %260 = dma.done [#allocation6], 256
        $region44: #{tpu_custom_call.1} parent=31 // pred_fallthru
          _
        %s261 = sand.u32 %s35, 1
        %s262 = scalar_lea.sflag [#allocation3], %s261
        %s263 = sand.u32 %s35, 1
        %s264 = smul.addr %s263, 4
        %s265 = scalar_lea.vmem [#allocation2], %s264
        %p266 = pneg %p48
        %p267 = pneg %p45
        %p268 = pneg %p69
        %p269 = pneg %p66
        %p270 = pneg %p90
        %p271 = pneg %p87
        %p272 = pneg %p116
        %p273 = pneg %p113
        %s274 = sand.u32 %s103, 1
        %s275 = scalar_lea.sflag [#allocation4], %s274
        %s276 = sand.u32 %s103, 1
        %s277 = smul.addr %s276, 4
        %s278 = scalar_lea.vmem [#allocation8], %s277
        %p279 = pneg %p142
        %p280 = pneg %p139
        %s281 = sand.u32 %s27, 1
        %s282 = scalar_lea.sflag [#allocation10], %s281
        %s283 = sand.u32 %s129, 1
        %s284 = smul.addr %s283, 4
        %s285 = scalar_lea.vmem [#allocation9], %s284
        %p286 = pneg %p168
        %p287 = pneg %p165
        %s288 = sand.u32 %s27, 1
        %s289 = scalar_lea.sflag [#allocation10], %s288
        %s290 = sand.u32 %s155, 1
        %s291 = scalar_lea.vmem [#allocation11], %s290
        %v292 = vld [vmem:[%s245] sm:$0xf]
        %v293 = vld [vmem:[#allocation5] sm:$0xff]
        %v294 = vld [vmem:[#allocation5 + $0x8] sm:$0xff]
        %v295 = vld [vmem:[#allocation7] sm:$0xff]
        %v296 = vld [vmem:[#allocation7 + $0x8] sm:$0xff]
        %vm297 = vcmask 130048
        %v299 = vsel %vm297, %v292, 0
        %301 = vmatpush.msra.mxu0 0.0
        %302 = vmatpush.msra.mxu0 0.0
        %303 = vmatpush.msra.mxu0 0.0
        %304 = vmatpush.msra.mxu0 0.0
        %305 = vmatpush.msra.mxu0 0.0
        %306 = vmatpush.msra.mxu0 0.0
        %307 = vmatpush.msra.mxu0 0.0
        %308 = vmatpush.msra.mxu0 0.0
        %309 = vmatpush.msra.mxu0 0.0
        %310 = vmatpush.msra.mxu0 0.0
        %311 = vmatpush.msra.mxu0 0.0
        %312 = vmatpush.msra.mxu0 0.0
        %313 = vmatpush.msra.mxu0 0.0
        %314 = vmatpush.msra.mxu0 0.0
        %v315 = vand.u32 %v294, 4294901760
        %316 = vmatpush.msra.mxu0 %v315
        %v317 = vand.u32 %v293, 4294901760
        %318 = vmatpush.msra.mxu0 %v317
        %v319 = vand.u32 %v299, 4294901760
        %v320 = vsub.f32 %v299, %v319
        %v321 = vand.u32 %v320, 4294901760
        %v322 = vsub.f32 %v320, %v321
        %v323 = vand.u32 %v322, 4294901760
        %324 = vmatmul.f32.gmra.mxu0 %v323
        %v325 = vpop.f32.mrf.mxu0
        %v326 = vadd.f32 0.0, %v325
        %327 = vdwg.mxu0
        %328 = vmatpush.msra.mxu0 0.0
        %329 = vmatpush.msra.mxu0 0.0
        %330 = vmatpush.msra.mxu0 0.0
        %331 = vmatpush.msra.mxu0 0.0
        %332 = vmatpush.msra.mxu0 0.0
        %333 = vmatpush.msra.mxu0 0.0
        %334 = vmatpush.msra.mxu0 0.0
        %335 = vmatpush.msra.mxu0 0.0
        %336 = vmatpush.msra.mxu0 0.0
        %337 = vmatpush.msra.mxu0 0.0
        %338 = vmatpush.msra.mxu0 0.0
        %339 = vmatpush.msra.mxu0 0.0
        %340 = vmatpush.msra.mxu0 0.0
        %341 = vmatpush.msra.mxu0 0.0
        %v342 = vand.u32 %v294, 4294901760
        %v343 = vsub.f32 %v294, %v342
        %v344 = vand.u32 %v343, 4294901760
        %v345 = vsub.f32 %v343, %v344
        %v346 = vand.u32 %v345, 4294901760
        %347 = vmatpush.msra.mxu0 %v346
        %v348 = vand.u32 %v293, 4294901760
        %v349 = vsub.f32 %v293, %v348
        %v350 = vand.u32 %v349, 4294901760
        %v351 = vsub.f32 %v349, %v350
        %v352 = vand.u32 %v351, 4294901760
        %353 = vmatpush.msra.mxu0 %v352
        %v354 = vand.u32 %v299, 4294901760
        %355 = vmatmul.f32.gmra.mxu0 %v354
        %v356 = vpop.f32.mrf.mxu0
        %v357 = vadd.f32 %v326, %v356
        %358 = vdwg.mxu0
        %359 = vmatpush.msra.mxu0 0.0
        %360 = vmatpush.msra.mxu0 0.0
        %361 = vmatpush.msra.mxu0 0.0
        %362 = vmatpush.msra.mxu0 0.0
        %363 = vmatpush.msra.mxu0 0.0
        %364 = vmatpush.msra.mxu0 0.0
        %365 = vmatpush.msra.mxu0 0.0
        %366 = vmatpush.msra.mxu0 0.0
        %367 = vmatpush.msra.mxu0 0.0
        %368 = vmatpush.msra.mxu0 0.0
        %369 = vmatpush.msra.mxu0 0.0
        %370 = vmatpush.msra.mxu0 0.0
        %371 = vmatpush.msra.mxu0 0.0
        %372 = vmatpush.msra.mxu0 0.0
        %v373 = vand.u32 %v294, 4294901760
        %v374 = vsub.f32 %v294, %v373
        %375 = vmatpush.msra.mxu0 %v374
        %v376 = vand.u32 %v293, 4294901760
        %v377 = vsub.f32 %v293, %v376
        %378 = vmatpush.msra.mxu0 %v377
        %v379 = vand.u32 %v299, 4294901760
        %v380 = vsub.f32 %v299, %v379
        %381 = vmatmul.f32.gmra.mxu0 %v380
        %v382 = vpop.f32.mrf.mxu0
        %v383 = vadd.f32 %v357, %v382
        %384 = vdwg.mxu0
        %385 = vmatpush.msra.mxu0 0.0
        %386 = vmatpush.msra.mxu0 0.0
        %387 = vmatpush.msra.mxu0 0.0
        %388 = vmatpush.msra.mxu0 0.0
        %389 = vmatpush.msra.mxu0 0.0
        %390 = vmatpush.msra.mxu0 0.0
        %391 = vmatpush.msra.mxu0 0.0
        %392 = vmatpush.msra.mxu0 0.0
        %393 = vmatpush.msra.mxu0 0.0
        %394 = vmatpush.msra.mxu0 0.0
        %395 = vmatpush.msra.mxu0 0.0
        %396 = vmatpush.msra.mxu0 0.0
        %397 = vmatpush.msra.mxu0 0.0
        %398 = vmatpush.msra.mxu0 0.0
        %v399 = vand.u32 %v294, 4294901760
        %400 = vmatpush.msra.mxu0 %v399
        %v401 = vand.u32 %v293, 4294901760
        %402 = vmatpush.msra.mxu0 %v401
        %v403 = vand.u32 %v299, 4294901760
        %v404 = vsub.f32 %v299, %v403
        %v405 = vand.u32 %v404, 4294901760
        %406 = vmatmul.f32.gmra.mxu0 %v405
        %v407 = vpop.f32.mrf.mxu0
        %v408 = vadd.f32 %v383, %v407
        %409 = vdwg.mxu0
        %410 = vmatpush.msra.mxu0 0.0
        %411 = vmatpush.msra.mxu0 0.0
        %412 = vmatpush.msra.mxu0 0.0
        %413 = vmatpush.msra.mxu0 0.0
        %414 = vmatpush.msra.mxu0 0.0
        %415 = vmatpush.msra.mxu0 0.0
        %416 = vmatpush.msra.mxu0 0.0
        %417 = vmatpush.msra.mxu0 0.0
        %418 = vmatpush.msra.mxu0 0.0
        %419 = vmatpush.msra.mxu0 0.0
        %420 = vmatpush.msra.mxu0 0.0
        %421 = vmatpush.msra.mxu0 0.0
        %422 = vmatpush.msra.mxu0 0.0
        %423 = vmatpush.msra.mxu0 0.0
        %v424 = vand.u32 %v294, 4294901760
        %v425 = vsub.f32 %v294, %v424
        %v426 = vand.u32 %v425, 4294901760
        %427 = vmatpush.msra.mxu0 %v426
        %v428 = vand.u32 %v293, 4294901760
        %v429 = vsub.f32 %v293, %v428
        %v430 = vand.u32 %v429, 4294901760
        %431 = vmatpush.msra.mxu0 %v430
        %v432 = vand.u32 %v299, 4294901760
        %433 = vmatmul.f32.gmra.mxu0 %v432
        %v434 = vpop.f32.mrf.mxu0
        %v435 = vadd.f32 %v408, %v434
        %436 = vdwg.mxu0
        %437 = vmatpush.msra.mxu0 0.0
        %438 = vmatpush.msra.mxu0 0.0
        %439 = vmatpush.msra.mxu0 0.0
        %440 = vmatpush.msra.mxu0 0.0
        %441 = vmatpush.msra.mxu0 0.0
        %442 = vmatpush.msra.mxu0 0.0
        %443 = vmatpush.msra.mxu0 0.0
        %444 = vmatpush.msra.mxu0 0.0
        %445 = vmatpush.msra.mxu0 0.0
        %446 = vmatpush.msra.mxu0 0.0
        %447 = vmatpush.msra.mxu0 0.0
        %448 = vmatpush.msra.mxu0 0.0
        %449 = vmatpush.msra.mxu0 0.0
        %450 = vmatpush.msra.mxu0 0.0
        %v451 = vand.u32 %v294, 4294901760
        %452 = vmatpush.msra.mxu0 %v451
        %v453 = vand.u32 %v293, 4294901760
        %454 = vmatpush.msra.mxu0 %v453
        %v455 = vand.u32 %v299, 4294901760
        %456 = vmatmul.f32.gmra.mxu0 %v455
        %v457 = vpop.f32.mrf.mxu0
        %v458 = vadd.f32 %v435, %v457
        %459 = vdwg.mxu0
        %460 = vmatpush.msra.mxu0 0.0
        %461 = vmatpush.msra.mxu0 0.0
        %462 = vmatpush.msra.mxu0 0.0
        %463 = vmatpush.msra.mxu0 0.0
        %464 = vmatpush.msra.mxu0 0.0
        %465 = vmatpush.msra.mxu0 0.0
        %466 = vmatpush.msra.mxu0 0.0
        %467 = vmatpush.msra.mxu0 0.0
        %468 = vmatpush.msra.mxu0 0.0
        %469 = vmatpush.msra.mxu0 0.0
        %470 = vmatpush.msra.mxu0 0.0
        %471 = vmatpush.msra.mxu0 0.0
        %472 = vmatpush.msra.mxu0 0.0
        %473 = vmatpush.msra.mxu0 0.0
        %v474 = vand.u32 %v296, 4294901760
        %475 = vmatpush.msra.mxu0 %v474
        %v476 = vand.u32 %v295, 4294901760
        %477 = vmatpush.msra.mxu0 %v476
        %v478 = vand.u32 %v299, 4294901760
        %v479 = vsub.f32 %v299, %v478
        %v480 = vand.u32 %v479, 4294901760
        %v481 = vsub.f32 %v479, %v480
        %v482 = vand.u32 %v481, 4294901760
        %483 = vmatmul.f32.gmra.mxu0 %v482
        %v484 = vpop.f32.mrf.mxu0
        %v485 = vadd.f32 0.0, %v484
        %486 = vdwg.mxu0
        %487 = vmatpush.msra.mxu0 0.0
        %488 = vmatpush.msra.mxu0 0.0
        %489 = vmatpush.msra.mxu0 0.0
        %490 = vmatpush.msra.mxu0 0.0
        %491 = vmatpush.msra.mxu0 0.0
        %492 = vmatpush.msra.mxu0 0.0
        %493 = vmatpush.msra.mxu0 0.0
        %494 = vmatpush.msra.mxu0 0.0
        %495 = vmatpush.msra.mxu0 0.0
        %496 = vmatpush.msra.mxu0 0.0
        %497 = vmatpush.msra.mxu0 0.0
        %498 = vmatpush.msra.mxu0 0.0
        %499 = vmatpush.msra.mxu0 0.0
        %500 = vmatpush.msra.mxu0 0.0
        %v501 = vand.u32 %v296, 4294901760
        %v502 = vsub.f32 %v296, %v501
        %v503 = vand.u32 %v502, 4294901760
        %v504 = vsub.f32 %v502, %v503
        %v505 = vand.u32 %v504, 4294901760
        %506 = vmatpush.msra.mxu0 %v505
        %v507 = vand.u32 %v295, 4294901760
        %v508 = vsub.f32 %v295, %v507
        %v509 = vand.u32 %v508, 4294901760
        %v510 = vsub.f32 %v508, %v509
        %v511 = vand.u32 %v510, 4294901760
        %512 = vmatpush.msra.mxu0 %v511
        %v513 = vand.u32 %v299, 4294901760
        %514 = vmatmul.f32.gmra.mxu0 %v513
        %v515 = vpop.f32.mrf.mxu0
        %v516 = vadd.f32 %v485, %v515
        %517 = vdwg.mxu0
        %518 = vmatpush.msra.mxu0 0.0
        %519 = vmatpush.msra.mxu0 0.0
        %520 = vmatpush.msra.mxu0 0.0
        %521 = vmatpush.msra.mxu0 0.0
        %522 = vmatpush.msra.mxu0 0.0
        %523 = vmatpush.msra.mxu0 0.0
        %524 = vmatpush.msra.mxu0 0.0
        %525 = vmatpush.msra.mxu0 0.0
        %526 = vmatpush.msra.mxu0 0.0
        %527 = vmatpush.msra.mxu0 0.0
        %528 = vmatpush.msra.mxu0 0.0
        %529 = vmatpush.msra.mxu0 0.0
        %530 = vmatpush.msra.mxu0 0.0
        %531 = vmatpush.msra.mxu0 0.0
        %v532 = vand.u32 %v296, 4294901760
        %v533 = vsub.f32 %v296, %v532
        %534 = vmatpush.msra.mxu0 %v533
        %v535 = vand.u32 %v295, 4294901760
        %v536 = vsub.f32 %v295, %v535
        %537 = vmatpush.msra.mxu0 %v536
        %v538 = vand.u32 %v299, 4294901760
        %v539 = vsub.f32 %v299, %v538
        %540 = vmatmul.f32.gmra.mxu0 %v539
        %v541 = vpop.f32.mrf.mxu0
        %v542 = vadd.f32 %v516, %v541
        %543 = vdwg.mxu0
        %544 = vmatpush.msra.mxu0 0.0
        %545 = vmatpush.msra.mxu0 0.0
        %546 = vmatpush.msra.mxu0 0.0
        %547 = vmatpush.msra.mxu0 0.0
        %548 = vmatpush.msra.mxu0 0.0
        %549 = vmatpush.msra.mxu0 0.0
        %550 = vmatpush.msra.mxu0 0.0
        %551 = vmatpush.msra.mxu0 0.0
        %552 = vmatpush.msra.mxu0 0.0
        %553 = vmatpush.msra.mxu0 0.0
        %554 = vmatpush.msra.mxu0 0.0
        %555 = vmatpush.msra.mxu0 0.0
        %556 = vmatpush.msra.mxu0 0.0
        %557 = vmatpush.msra.mxu0 0.0
        %v558 = vand.u32 %v296, 4294901760
        %559 = vmatpush.msra.mxu0 %v558
        %v560 = vand.u32 %v295, 4294901760
        %561 = vmatpush.msra.mxu0 %v560
        %v562 = vand.u32 %v299, 4294901760
        %v563 = vsub.f32 %v299, %v562
        %v564 = vand.u32 %v563, 4294901760
        %565 = vmatmul.f32.gmra.mxu0 %v564
        %v566 = vpop.f32.mrf.mxu0
        %v567 = vadd.f32 %v542, %v566
        %568 = vdwg.mxu0
        %569 = vmatpush.msra.mxu0 0.0
        %570 = vmatpush.msra.mxu0 0.0
        %571 = vmatpush.msra.mxu0 0.0
        %572 = vmatpush.msra.mxu0 0.0
        %573 = vmatpush.msra.mxu0 0.0
        %574 = vmatpush.msra.mxu0 0.0
        %575 = vmatpush.msra.mxu0 0.0
        %576 = vmatpush.msra.mxu0 0.0
        %577 = vmatpush.msra.mxu0 0.0
        %578 = vmatpush.msra.mxu0 0.0
        %579 = vmatpush.msra.mxu0 0.0
        %580 = vmatpush.msra.mxu0 0.0
        %581 = vmatpush.msra.mxu0 0.0
        %582 = vmatpush.msra.mxu0 0.0
        %v583 = vand.u32 %v296, 4294901760
        %v584 = vsub.f32 %v296, %v583
        %v585 = vand.u32 %v584, 4294901760
        %586 = vmatpush.msra.mxu0 %v585
        %v587 = vand.u32 %v295, 4294901760
        %v588 = vsub.f32 %v295, %v587
        %v589 = vand.u32 %v588, 4294901760
        %590 = vmatpush.msra.mxu0 %v589
        %v591 = vand.u32 %v299, 4294901760
        %592 = vmatmul.f32.gmra.mxu0 %v591
        %v593 = vpop.f32.mrf.mxu0
        %v594 = vadd.f32 %v567, %v593
        %595 = vdwg.mxu0
        %596 = vmatpush.msra.mxu0 0.0
        %597 = vmatpush.msra.mxu0 0.0
        %598 = vmatpush.msra.mxu0 0.0
        %599 = vmatpush.msra.mxu0 0.0
        %600 = vmatpush.msra.mxu0 0.0
        %601 = vmatpush.msra.mxu0 0.0
        %602 = vmatpush.msra.mxu0 0.0
        %603 = vmatpush.msra.mxu0 0.0
        %604 = vmatpush.msra.mxu0 0.0
        %605 = vmatpush.msra.mxu0 0.0
        %606 = vmatpush.msra.mxu0 0.0
        %607 = vmatpush.msra.mxu0 0.0
        %608 = vmatpush.msra.mxu0 0.0
        %609 = vmatpush.msra.mxu0 0.0
        %v610 = vand.u32 %v296, 4294901760
        %611 = vmatpush.msra.mxu0 %v610
        %v612 = vand.u32 %v295, 4294901760
        %613 = vmatpush.msra.mxu0 %v612
        %v614 = vand.u32 %v299, 4294901760
        %615 = vmatmul.f32.gmra.mxu0 %v614
        %v616 = vpop.f32.mrf.mxu0
        %v617 = vadd.f32 %v594, %v616
        %618 = vdwg.mxu0
        %619 = vst [vmem:[%s278] sm:$0xf] %v458
        %620 = vst [vmem:[%s285] sm:$0xf] %v617
        %v621 = vmul.f32 %v458, %v458
        %v622 = vmul.f32 %v617, %v617
        %v623 = vadd.f32 %v621, %v622
        %vm624 = vcmask 1043456
        %v625 = vsel %vm624, %v623, 0.0
        %v626 = vrot.slane %v625, 4
        %v627 = vadd.f32 %v625, %v626
        %v628 = vrot.slane %v627, 2
        %v629 = vadd.f32 %v627, %v628
        %v630 = vrot.slane %v629, 1
        %v631 = vadd.f32 %v629, %v630
        %632 = vst [vmem:[%s291] sm:$0x1] %v631
        %s633 = sand.u32 %s103, 1
        %s634 = scalar_lea.sflag [#allocation4], %s633
        %s635 = sand.u32 %s103, 1
        %s636 = smul.addr %s635, 4
        %s637 = scalar_lea.vmem [#allocation8], %s636
        %s638 = sand.u32 %s27, 1
        %s639 = scalar_lea.sflag [#allocation10], %s638
        %s640 = sand.u32 %s129, 1
        %s641 = smul.addr %s640, 4
        %s642 = scalar_lea.vmem [#allocation9], %s641
        %s643 = sand.u32 %s27, 1
        %s644 = scalar_lea.sflag [#allocation10], %s643
        %s645 = sand.u32 %s155, 1
        %s646 = scalar_lea.vmem [#allocation11], %s645
        // Predicated region
        $region45: #{tpu_custom_call.1} parent=31 // pred_check
          %p647 = pneg %p113
        $region46: #{tpu_custom_call.1} parent=31 // pred_check_branch
          %649 = sbr.rel (%p647) target = $region48
        $region47: #{tpu_custom_call.1} parent=31 // pred_region
          %651 = vsyncadd %s634, 0
          %s652 = smul.addr %s27, 4
          %s653 = scalar_lea.hbm %s3, %s652
          %s655 = sshll.u32 %s637, 4
          %s656 = int_to_ptr.vmem [resolvable:$true] %s655
          %s657 = sshll.u32 %s653, 4
          %s658 = int_to_ptr.hbm [resolvable:$true] %s657
          %660 = dma.vmem_to_hbm [thread:$0]  %s656, 64, %s658, %s634
        $region48: #{tpu_custom_call.1} parent=31 // pred_fallthru
          _
        // Predicated region
        $region49: #{tpu_custom_call.1} parent=31 // pred_check
          %p661 = pneg %p139
        $region50: #{tpu_custom_call.1} parent=31 // pred_check_branch
          %663 = sbr.rel (%p661) target = $region52
        $region51: #{tpu_custom_call.1} parent=31 // pred_region
          %665 = vsyncadd %s639, 0
          %s666 = smul.addr %s27, 4
          %s667 = scalar_lea.hbm %s4, %s666
          %s669 = sshll.u32 %s642, 4
          %s670 = int_to_ptr.vmem [resolvable:$true] %s669
          %s671 = sshll.u32 %s667, 4
          %s672 = int_to_ptr.hbm [resolvable:$true] %s671
          %674 = dma.vmem_to_hbm [thread:$0]  %s670, 64, %s672, %s639
        $region52: #{tpu_custom_call.1} parent=31 // pred_fallthru
          _
        // Predicated region
        $region53: #{tpu_custom_call.1} parent=31 // pred_check
          %p675 = pneg %p165
        $region54: #{tpu_custom_call.1} parent=31 // pred_check_branch
          %677 = sbr.rel (%p675) target = $region56
        $region55: #{tpu_custom_call.1} parent=31 // pred_region
          %679 = vsyncadd %s644, 0
          %s680 = scalar_lea.hbm %s5, %s27
          %s682 = sshll.u32 %s646, 4
          %s683 = int_to_ptr.vmem [resolvable:$true] %s682
          %s684 = sshll.u32 %s680, 4
          %s685 = int_to_ptr.hbm [resolvable:$true] %s684
          %687 = dma.vmem_to_hbm [thread:$0]  %s683, 16, %s685, %s644
        $region56: #{tpu_custom_call.1} parent=31 // pred_fallthru
          _
      $region32: #{tpu_custom_call.1} parent=5 // pred_fallthru
        _
      %p688 = scmp.le.s32.totalorder 2, %s22
      // Predicated region
      $region57: #{tpu_custom_call.1} parent=5 // pred_check
        %p689 = pneg %p688
      $region58: #{tpu_custom_call.1} parent=5 // pred_check_branch
        %691 = sbr.rel (%p689) target = $region60
      $region59: #{tpu_custom_call.1} parent=5 // pred_region
        %s692 = ssub.s32 %s22, 2
        // Predicated region
        $region61: #{tpu_custom_call.1} parent=59 // pred_check
          %p693 = pneg %p119
        $region62: #{tpu_custom_call.1} parent=59 // pred_check_branch
          %695 = sbr.rel (%p693) target = $region64
        $region63: #{tpu_custom_call.1} parent=59 // pred_region
          %s696 = sand.u32 %s104, 1
          %s697 = scalar_lea.sflag [#allocation4], %s696
          %s698 = sand.u32 %s104, 1
          %s699 = smul.addr %s698, 4
          %s700 = scalar_lea.vmem [#allocation8], %s699
          %702 = dma.done %s697, 64
        $region64: #{tpu_custom_call.1} parent=59 // pred_fallthru
          _
        // Predicated region
        $region65: #{tpu_custom_call.1} parent=59 // pred_check
          %p703 = pneg %p145
        $region66: #{tpu_custom_call.1} parent=59 // pred_check_branch
          %705 = sbr.rel (%p703) target = $region68
        $region67: #{tpu_custom_call.1} parent=59 // pred_region
          %s706 = sand.u32 %s28, 1
          %s707 = scalar_lea.sflag [#allocation10], %s706
          %s708 = sand.u32 %s130, 1
          %s709 = smul.addr %s708, 4
          %s710 = scalar_lea.vmem [#allocation9], %s709
          %712 = dma.done %s707, 64
        $region68: #{tpu_custom_call.1} parent=59 // pred_fallthru
          _
        // Predicated region
        $region69: #{tpu_custom_call.1} parent=59 // pred_check
          %p713 = pneg %p171
        $region70: #{tpu_custom_call.1} parent=59 // pred_check_branch
          %715 = sbr.rel (%p713) target = $region72
        $region71: #{tpu_custom_call.1} parent=59 // pred_region
          %s716 = sand.u32 %s28, 1
          %s717 = scalar_lea.sflag [#allocation10], %s716
          %s718 = sand.u32 %s156, 1
          %s719 = scalar_lea.vmem [#allocation11], %s718
          %721 = dma.done %s717, 16
        $region72: #{tpu_custom_call.1} parent=59 // pred_fallthru
          _
      $region60: #{tpu_custom_call.1} parent=5 // pred_fallthru
        _
    $region6: #{tpu_custom_call.1} parent=1 // loop_footer
      %s26 = sadd.s32 1, %s22
    $region7: #{tpu_custom_call.1} parent=1 // loop_footer_branch
      %21 = sbr.rel target = $region3
    $region8: #{tpu_custom_call.1} parent=1 // loop_exit
      _
    %722 = vsyncpa [#allocation3], 1
    %s723 = scalar_lea.sflag [#allocation3], 1
    %724 = vsyncpa %s723, 1
    %725 = vsyncpa [#allocation6], 1
    %726 = vsyncpa [#allocation4], 1
    %s727 = scalar_lea.sflag [#allocation4], 1
    %728 = vsyncpa %s727, 1
    %729 = vsyncpa [#allocation10], 1
    %s730 = scalar_lea.sflag [#allocation10], 1
    %731 = vsyncpa %s730, 1

</llo_original>
